<compile_context>
chip_gen: v6e
topology: v6e:2x2x1
jax: 0.10.0
libtpu: 0.0.40
codegen_flags: <defaults>
</compile_context>

<pallas_src>
import jax
import jax.numpy as jnp
from jax.experimental import pallas as pl
from jax.experimental.pallas import tpu as pltpu

LANES = 128
TARGET_BLOCK_BYTES = 8 * 1024 * 1024   # ~8 MiB per block (4x double-buffered = 32 MiB VMEM)
VMEM_LIMIT_BYTES = 48 * 2**20          # accept the larger blocks on all generations
MIN_SPLIT_BYTES = 2 * 1024 * 1024      # split small inputs only if each half >= 1 MiB


def _softsign_kernel(x_ref, o_ref):
    x = x_ref[...]
    dt = jnp.dtype(x_ref.dtype)
    if jnp.issubdtype(dt, jnp.floating) and dt.itemsize <= 2:
        # bf16/f16: reciprocal goes to the EUP slot (free), VPU only does
        # abs/add/mul; ~2^-12 rel error is far below half-precision rounding.
        xf = x.astype(jnp.float32)
        denom = 1.0 + jnp.abs(xf)
        o_ref[...] = (xf * pl.reciprocal(denom, approx=True)).astype(o_ref.dtype)
    else:
        # f32: exact divide (keeps 1e-6 accuracy), still nowhere near the
        # HBM-bound roofline on any generation.
        o_ref[...] = x / (1 + jnp.abs(x))


@jax.jit
def softsign_pallas(x: jax.Array) -> jax.Array:
    """Elementwise softsign via a Pallas TPU kernel (float dtypes)."""
    orig_shape = x.shape
    dtype = x.dtype
    n = x.size
    if n == 0:
        return x

    itemsize = jnp.dtype(dtype).itemsize
    sub = max(8, 32 // max(itemsize, 1))  # 8 (f32), 16 (bf16/f16), 32 (8-bit)

    rows = n // LANES
    if rows * LANES != n:
        # Ragged (non-lane-aligned) size: a pad + slice round-trip would add
        # 2-3 extra full HBM passes to an HBM-bound op, so just let XLA do the
        # single fused read/write pass.
        return x / (1 + jnp.abs(x))

    x2d = x.reshape(rows, LANES)  # metadata-only under jit

    # Block sizing: ~TARGET_BLOCK_BYTES per block, rows a multiple of `sub`.
    tile_rows = max(sub, (TARGET_BLOCK_BYTES // (LANES * itemsize)) // sub * sub)
    if rows > tile_rows:
        grid_rows = tile_rows
    else:
        total_bytes = rows * LANES * itemsize
        if total_bytes >= MIN_SPLIT_BYTES:
            # Big enough that splitting in two is worth it for v7x's 2 TCs.
            half = -(-rows // 2)
            half = -(-half // sub) * sub
            grid_rows = half if half < rows else rows
        else:
            # Small activation: single block — avoids a wasted extra grid
            # step (~0.35 us) on single-TC v5e/v6e.
            grid_rows = rows
    grid = (pl.cdiv(rows, grid_rows),)

    out2d = pl.pallas_call(
        _softsign_kernel,
        out_shape=jax.ShapeDtypeStruct((rows, LANES), dtype),
        grid_spec=pltpu.PrefetchScalarGridSpec(
            num_scalar_prefetch=0,
            grid=grid,
            in_specs=[pl.BlockSpec((grid_rows, LANES), lambda i: (i, 0))],
            out_specs=pl.BlockSpec((grid_rows, LANES), lambda i: (i, 0)),
        ),
        compiler_params=pltpu.CompilerParams(
            dimension_semantics=("parallel",),
            vmem_limit_bytes=VMEM_LIMIT_BYTES,
        ),
    )(x2d)

    return out2d.reshape(orig_shape)


if __name__ == "__main__":
    key = jax.random.PRNGKey(0)

    # Shape implied by the module's forward (NCHW activation input).
    x = jax.random.normal(key, (2, 4, 16, 16), dtype=jnp.float32) * 3.0
    y = softsign_pallas(x)
    jax.block_until_ready(y)
    y_ref = x / (1.0 + jnp.abs(x))
    assert y.shape == x.shape and y.dtype == x.dtype
    assert jnp.allclose(y, y_ref, atol=1e-6, rtol=1e-6)

    # Larger lane-aligned input to exercise the multi-block path.
    x1 = jax.random.normal(jax.random.PRNGKey(2), (8, 64, 64, 64), dtype=jnp.float32)
    y1 = softsign_pallas(x1)
    jax.block_until_ready(y1)
    assert jnp.allclose(y1, x1 / (1.0 + jnp.abs(x1)), atol=1e-6, rtol=1e-6)

    # Ragged (non-lane-aligned) shape exercises the XLA fallback path.
    x2 = jax.random.normal(jax.random.PRNGKey(1), (3, 5, 7), dtype=jnp.float32)
    y2 = softsign_pallas(x2)
    jax.block_until_ready(y2)
    assert jnp.allclose(y2, x2 / (1.0 + jnp.abs(x2)), atol=1e-6, rtol=1e-6)

    # bf16 path (approx reciprocal) with half-precision tolerance.
    x3 = (jax.random.normal(jax.random.PRNGKey(3), (4, 8, 32, 32)) * 2.0).astype(jnp.bfloat16)
    y3 = softsign_pallas(x3)
    jax.block_until_ready(y3)
    ref3 = (x3.astype(jnp.float32) / (1.0 + jnp.abs(x3.astype(jnp.float32))))
    assert y3.dtype == jnp.bfloat16
    assert jnp.allclose(y3.astype(jnp.float32), ref3, atol=2e-2, rtol=2e-2)

    print("KERNEL_OK")
</pallas_src>

<mosaic_0001>
module attributes {stable_mosaic.version = 11 : i64} {
  func.func @_softsign_kernel(%arg0: i32, %arg1: memref<16x128xf32, #tpu.memory_space<vmem>>, %arg2: memref<16x128xf32, #tpu.memory_space<vmem>>) attributes {dimension_semantics = [#tpu.dimension_semantics<parallel>], iteration_bounds = array<i64: 1>, scalar_prefetch = 0 : i64, scratch_operands = 0 : i64, tpu.core_type = #tpu.core_type<tc>, window_params = [{transform_indices = @transform_0, window_bounds = array<i64: 16, 128>}, {transform_indices = @transform_1, window_bounds = array<i64: 16, 128>}]} {
    %c0 = arith.constant 0 : index
    %c0_0 = arith.constant 0 : index
    %0 = vector.load %arg1[%c0, %c0_0] : memref<16x128xf32, #tpu.memory_space<vmem>>, vector<16x128xf32>
    %1 = math.absf %0 : vector<16x128xf32>
    %cst = arith.constant 1.000000e+00 : f32
    %2 = vector.broadcast %cst : f32 to vector<16x128xf32>
    %3 = arith.addf %2, %1 : vector<16x128xf32>
    %4 = arith.divf %0, %3 : vector<16x128xf32>
    %c0_1 = arith.constant 0 : index
    %c0_2 = arith.constant 0 : index
    %5 = vector.load %arg2[%c0_1, %c0_2] : memref<16x128xf32, #tpu.memory_space<vmem>>, vector<16x128xf32>
    tpu.vector_store %arg2[%c0_1, %c0_2], %4 {strides = array<i32>} : memref<16x128xf32, #tpu.memory_space<vmem>>, vector<16x128xf32>,
    return
  }
  func.func @transform_0(%arg0: i32) -> (i32, i32) {
    %c0_i32 = arith.constant 0 : i32
    %c0_i32_0 = arith.constant 0 : i32
    return %arg0, %c0_i32 : i32, i32
  }
  func.func @transform_1(%arg0: i32) -> (i32, i32) {
    %c0_i32 = arith.constant 0 : i32
    %c0_i32_0 = arith.constant 0 : i32
    return %arg0, %c0_i32 : i32, i32
  }
}

</mosaic_0001>

<llo_original>
// kernel: softsign_pallas.1
$region0: #{softsign_pallas.1}
  #allocation0 [shape = 'u32[]', space=smem, size = 0x4, offset = 0x4, fixed_abs, tag = 'smem constant byte address 0x4 - core index']
  #allocation1 [shape = 'u32[144,128]{1,0:T(1,128)}', space=vmem, size = 0x12000, scoped, tag = 'internal scratch']
  %s0 = inlined_call_operand.vmem [shape: f32[16,128], index: 0, kind: input, shape index: {}]
  %s1 = inlined_call_operand.vmem [shape: f32[16,128], index: 1, kind: output, shape index: {}]
  %s2 = sld [smem:[#allocation0]]
  $region14: #{softsign_pallas.1} parent=0
    _
  %s4 = ssub.s32 1, %s2
  %s5 = scalar_select 0, %s4, %s2
  // Predicated region
  $region2: #{softsign_pallas.1} parent=0 // pred_check
    _
  $region3: #{softsign_pallas.1} parent=0 // pred_check_branch
    %7 = sbr.rel (0) target = $region5
  $region4: #{softsign_pallas.1} parent=0 // pred_region
    _
  $region5: #{softsign_pallas.1} parent=0 // pred_fallthru
    _
  %v8 = vld [vmem:[%s0] sm:$0xff]
  %v9 = vld [vmem:[%s0 + $0x8] sm:$0xff]
  %v10 = vand.u32 2147483647, %v8
  %v11 = vand.u32 2147483647, %v9
  %v12 = vadd.f32 %v10, 1.0
  %v13 = vadd.f32 %v11, 1.0
  %v14 = vrcp.pop %v12
  %v15 = vmul.f32 %v8, %v14
  %v16 = vrcp.pop %v13
  %v17 = vmul.f32 %v9, %v16
  %18 = vst [vmem:[%s1] sm:$0xff] %v15
  %19 = vst [vmem:[%s1 + $0x8] sm:$0xff] %v17
  // Predicated region
  $region6: #{softsign_pallas.1} parent=0 // pred_check
    _
  $region7: #{softsign_pallas.1} parent=0 // pred_check_branch
    %21 = sbr.rel (0) target = $region9
  $region8: #{softsign_pallas.1} parent=0 // pred_region
    _
  $region9: #{softsign_pallas.1} parent=0 // pred_fallthru
    _
  // Predicated region
  $region10: #{softsign_pallas.1} parent=0 // pred_check
    _
  $region11: #{softsign_pallas.1} parent=0 // pred_check_branch
    %23 = sbr.rel (0) target = $region13
  $region12: #{softsign_pallas.1} parent=0 // pred_region
    _
  $region13: #{softsign_pallas.1} parent=0 // pred_fallthru
    _

</llo_original>
